<compile_context>
chip_gen: v7x
topology: tpu7x:2x2x1
jax: 0.10.0
libtpu: 0.0.40
codegen_flags: <defaults>
</compile_context>

<pallas_src>
import functools

import jax
import jax.numpy as jnp
from jax.experimental import pallas as pl
from jax.experimental.pallas import tpu as pltpu


def _round_up(n, m):
    return ((n + m - 1) // m) * m


def _fused_ae_kernel(x_ref, w_ref, b_ref, out_ref):
    # Single MXU matmul: (tb, F) @ (F, F) -> (tb, F), f32 accumulation.
    y = jnp.dot(x_ref[...], w_ref[...], preferred_element_type=jnp.float32)
    # f32 bias add on the VPU, then cast to the output dtype.
    out_ref[...] = (y + b_ref[...]).astype(out_ref.dtype)


def fuse_params(w_enc, b_enc, w_dec, b_dec, compute_dtype=jnp.float32):
    """One-time prep: algebraically fuse encoder+decoder (exact for eval-mode forward).

      out = x @ (W_dec @ W_enc)^T + (W_dec @ b_enc + b_dec)

    Returns:
      w_fused: (F, F) in K-major layout ((W_dec @ W_enc)^T, i.e. rows = input features,
               cols = output features) so the kernel contracts LHS-last with RHS-first
               (MXU-preferred), cast once to compute_dtype.
      b_fused: (1, F) kept in float32 for an f32 bias add.
    """
    w_fused = (w_dec @ w_enc).T.astype(compute_dtype)                 # (F_in, F_out)
    b_fused = (w_dec @ b_enc + b_dec).reshape(1, -1).astype(jnp.float32)
    return w_fused, b_fused


@functools.partial(jax.jit, static_argnames=("tile_b", "compute_dtype"))
def autoencoder_forward_fused(x, w_fused, b_fused, *, tile_b=512,
                              compute_dtype=jnp.float32):
    """Eval-mode AutoEncoder forward.

    x:        (B, F) input (any float dtype; output dtype matches x).
    w_fused:  (F, F) from fuse_params (K-major fused weight).
    b_fused:  (1, F) float32 fused bias.
    """
    B, F = x.shape
    assert w_fused.shape == (F, F) and b_fused.shape == (1, F)
    out_dtype = x.dtype

    # Batch tile: multiple of 16 (safe for f32 and bf16 sublane packing), capped by B.
    tb = min(_round_up(tile_b, 16), _round_up(B, 16))
    Bp = _round_up(B, tb)

    # Only the batch dim is padded (feature dim stays at F — no inflated HBM traffic).
    x_c = x.astype(compute_dtype)
    if Bp != B:
        x_c = jnp.pad(x_c, ((0, Bp - B), (0, 0)))

    grid = (Bp // tb,)
    out = pl.pallas_call(
        _fused_ae_kernel,
        out_shape=jax.ShapeDtypeStruct((Bp, F), out_dtype),
        grid_spec=pltpu.PrefetchScalarGridSpec(
            num_scalar_prefetch=0,
            grid=grid,
            in_specs=[
                pl.BlockSpec((tb, F), lambda i: (i, 0)),  # x tile moves with the grid
                pl.BlockSpec((F, F), lambda i: (0, 0)),   # fused weight VMEM-resident
                pl.BlockSpec((1, F), lambda i: (0, 0)),   # fused bias VMEM-resident
            ],
            out_specs=pl.BlockSpec((tb, F), lambda i: (i, 0)),
        ),
        compiler_params=pltpu.CompilerParams(
            # Batch tiles are independent -> megacore sharding on v7x's two TCs.
            dimension_semantics=("parallel",),
        ),
    )(x_c, w_fused, b_fused)

    return out[:B] if Bp != B else out


def autoencoder_forward(x, w_enc, b_enc, w_dec, b_dec, *, tile_b=512,
                        compute_dtype=jnp.float32):
    """Convenience wrapper: fuses params then runs the kernel.  For repeated calls,
    call fuse_params once and reuse autoencoder_forward_fused directly."""
    w_fused, b_fused = fuse_params(w_enc, b_enc, w_dec, b_dec,
                                   compute_dtype=compute_dtype)
    return autoencoder_forward_fused(x, w_fused, b_fused, tile_b=tile_b,
                                     compute_dtype=compute_dtype)


def init_params(key, num_features, latent_dim):
    """Deterministic init mimicking torch.nn.Linear default U[-1/sqrt(fan_in), 1/sqrt(fan_in)]."""
    k1, k2, k3, k4 = jax.random.split(key, 4)
    bound_enc = 1.0 / jnp.sqrt(num_features)
    bound_dec = 1.0 / jnp.sqrt(latent_dim)
    w_enc = jax.random.uniform(k1, (latent_dim, num_features), jnp.float32,
                               -bound_enc, bound_enc)
    b_enc = jax.random.uniform(k2, (latent_dim,), jnp.float32, -bound_enc, bound_enc)
    w_dec = jax.random.uniform(k3, (num_features, latent_dim), jnp.float32,
                               -bound_dec, bound_dec)
    b_dec = jax.random.uniform(k4, (num_features,), jnp.float32, -bound_dec, bound_dec)
    return w_enc, b_enc, w_dec, b_dec


if __name__ == "__main__":
    # B=2048 with tile_b=512 -> 4 grid steps, so each v7x TensorCore gets 2 steps and
    # the BlockSpec pipeline actually double-buffers the x-tile DMA.
    B = 2048         # batch
    F = 32           # num_features
    L = 16           # latent_dim (paper default)

    key = jax.random.PRNGKey(0)
    kx, kp = jax.random.split(key)
    x = jax.random.normal(kx, (B, F), jnp.float32)
    w_enc, b_enc, w_dec, b_dec = init_params(kp, F, L)

    # One-time param fusion (outside the hot path), then the hot-path call.
    # (Use compute_dtype=jnp.bfloat16 here on v5e / for lower DMA bytes; demo keeps f32
    #  so the reference check below stays tight.)
    w_fused, b_fused = fuse_params(w_enc, b_enc, w_dec, b_dec, compute_dtype=jnp.float32)
    out = autoencoder_forward_fused(x, w_fused, b_fused, tile_b=512)
    out = jax.block_until_ready(out)

    # Reference in plain JAX (same math as the PyTorch eval-mode forward, unfused).
    z_ref = x @ w_enc.T + b_enc
    ref = z_ref @ w_dec.T + b_dec
    assert out.shape == (B, F)
    err = float(jnp.max(jnp.abs(out - ref)))
    assert jnp.allclose(out, ref, atol=1e-4, rtol=1e-4), err

    print("KERNEL_OK")
</pallas_src>

<mosaic_0001>
module attributes {stable_mosaic.version = 11 : i64} {
  func.func @_fused_ae_kernel(%arg0: i32, %arg1: memref<512x32xf32, #tpu.memory_space<vmem>>, %arg2: memref<32x32xf32, #tpu.memory_space<vmem>>, %arg3: memref<1x32xf32, #tpu.memory_space<vmem>>, %arg4: memref<512x32xf32, #tpu.memory_space<vmem>>) attributes {dimension_semantics = [#tpu.dimension_semantics<parallel>], iteration_bounds = array<i64: 4>, scalar_prefetch = 0 : i64, scratch_operands = 0 : i64, tpu.core_type = #tpu.core_type<tc>, window_params = [{transform_indices = @transform_0, window_bounds = array<i64: 512, 32>}, {pipeline_mode = #tpu.pipeline_mode<synchronous>, transform_indices = @transform_1, window_bounds = array<i64: 32, 32>}, {pipeline_mode = #tpu.pipeline_mode<synchronous>, transform_indices = @transform_2, window_bounds = array<i64: 1, 32>}, {transform_indices = @transform_3, window_bounds = array<i64: 512, 32>}]} {
    %c0 = arith.constant 0 : index
    %c0_0 = arith.constant 0 : index
    %0 = vector.load %arg1[%c0, %c0_0] : memref<512x32xf32, #tpu.memory_space<vmem>>, vector<512x32xf32>
    %c0_1 = arith.constant 0 : index
    %c0_2 = arith.constant 0 : index
    %1 = vector.load %arg2[%c0_1, %c0_2] : memref<32x32xf32, #tpu.memory_space<vmem>>, vector<32x32xf32>
    %cst = arith.constant dense<0.000000e+00> : vector<512x32xf32>
    %2 = tpu.matmul %0, %1, %cst {dimension_numbers = #tpu.dot_dimension_numbers<[1], [0], [0], [1], [0, 0, 1, 1], [], []>} : vector<512x32xf32>, vector<32x32xf32>, vector<512x32xf32> -> vector<512x32xf32>
    %c0_3 = arith.constant 0 : index
    %c0_4 = arith.constant 0 : index
    %3 = vector.load %arg3[%c0_3, %c0_4] : memref<1x32xf32, #tpu.memory_space<vmem>>, vector<1x32xf32>
    %4 = vector.broadcast %3 : vector<1x32xf32> to vector<512x32xf32>
    %5 = arith.addf %2, %4 : vector<512x32xf32>
    %c0_5 = arith.constant 0 : index
    %c0_6 = arith.constant 0 : index
    %6 = vector.load %arg4[%c0_5, %c0_6] : memref<512x32xf32, #tpu.memory_space<vmem>>, vector<512x32xf32>
    tpu.vector_store %arg4[%c0_5, %c0_6], %5 {strides = array<i32>} : memref<512x32xf32, #tpu.memory_space<vmem>>, vector<512x32xf32>,
    return
  }
  func.func @transform_0(%arg0: i32) -> (i32, i32) {
    %c0_i32 = arith.constant 0 : i32
    %c0_i32_0 = arith.constant 0 : i32
    return %arg0, %c0_i32 : i32, i32
  }
  func.func @transform_1(%arg0: i32) -> (i32, i32) {
    %c0_i32 = arith.constant 0 : i32
    %c0_i32_0 = arith.constant 0 : i32
    %c0_i32_1 = arith.constant 0 : i32
    return %c0_i32, %c0_i32_0 : i32, i32
  }
  func.func @transform_2(%arg0: i32) -> (i32, i32) {
    %c0_i32 = arith.constant 0 : i32
    %c0_i32_0 = arith.constant 0 : i32
    %c0_i32_1 = arith.constant 0 : i32
    return %c0_i32, %c0_i32_0 : i32, i32
  }
  func.func @transform_3(%arg0: i32) -> (i32, i32) {
    %c0_i32 = arith.constant 0 : i32
    %c0_i32_0 = arith.constant 0 : i32
    return %arg0, %c0_i32 : i32, i32
  }
}

</mosaic_0001>

<llo_original>
// kernel: autoencoder_forward_fused.1
$region0: #{autoencoder_forward_fused.1}
  #allocation0 [shape = 'u32[]', space=smem, size = 0x4, offset = 0x4, fixed_abs, tag = 'smem constant byte address 0x4 - core index']
  #allocation1 [shape = 'u32[144,128]{1,0:T(1,128)}', space=vmem, size = 0x12000, scoped, tag = 'internal scratch']
  %s0 = inlined_call_operand.vmem [shape: f32[2048,32], index: 0, kind: input, shape index: {}]
  %s1 = inlined_call_operand.vmem [shape: f32[32,32], index: 1, kind: input, shape index: {}]
  %s2 = inlined_call_operand.vmem [shape: f32[1,32], index: 2, kind: input, shape index: {}]
  %s3 = inlined_call_operand.vmem [shape: f32[2048,32], index: 3, kind: output, shape index: {}]
  %s4 = sld [smem:[#allocation0]]
  $region45: #{autoencoder_forward_fused.1} parent=0
    _
  %s6 = ssub.s32 1, %s4
  %s7 = scalar_select 0, %s6, %s4
  loop: start=0, step=1, limit=6
  $region2: #{autoencoder_forward_fused.1} parent=0 // loop_pre_header
    _
  $region3: #{autoencoder_forward_fused.1} parent=0 // loop_header
    %s9 = sphi 0, %s13
    %p10 = scmp.ge.s32.totalorder %s9, 6
    %s19 = sphi 0, %s21
    %s22 = sphi 0, %s19
    %s23 = sphi 0, %s22
    %s39 = sphi 0, %s23
    %s43 = sphi 0, %s43
    %s45 = sphi 0, %s43
    %s46 = sphi 0, %s45
    %s60 = sphi 0, %s46
    %s64 = sphi 0, %s64
    %s66 = sphi 0, %s64
    %s67 = sphi 0, %s66
    %s81 = sphi 0, %s67
    %s87 = sphi 0, %s89
    %s90 = sphi 0, %s87
    %s91 = sphi 0, %s90
    %s107 = sphi 0, %s91
  $region4: #{autoencoder_forward_fused.1} parent=0 // loop_header_branch
    %12 = sbr.rel (%p10) target = $region8
  $region5: #{autoencoder_forward_fused.1} parent=0 // loop_body
    %s14 = ssub.s32 %s9, 1
    %s15 = ssub.s32 %s9, 2
    %s16 = sadd.s32 %s9, 1
    %s17 = ssub.s32 %s9, %s16
    %p18 = scmp.eq.s32.totalorder %s17, 0
    %s20 = sadd.s32 %s19, 1
    %s21 = scalar_select %p18, %s19, %s20
    %p24 = pneg %p18
    %p25 = scmp.eq.s32.totalorder %s9, 3
    %p26 = por %p24, %p25
    %p27 = scmp.ne.s32.totalorder %s19, %s22
    %p28 = scmp.eq.s32.totalorder %s9, 0
    %p29 = por %p27, %p28
    %p30 = scmp.ne.s32.totalorder %s19, %s22
    %p31 = scmp.eq.s32.totalorder %s14, 3
    %p32 = por %p30, %p31
    %p33 = scmp.ne.s32.totalorder %s22, %s23
    %p34 = scmp.eq.s32.totalorder %s14, 0
    %p35 = por %p33, %p34
    %p36 = scmp.ne.s32.totalorder %s22, %s23
    %p37 = scmp.eq.s32.totalorder %s15, 3
    %p38 = por %p36, %p37
    %p40 = scmp.ne.s32.totalorder %s23, %s39
    %p41 = scmp.eq.s32.totalorder %s15, 0
    %p42 = por %p40, %p41
    %s44 = sadd.s32 %s43, 1
    %p47 = scmp.eq.s32.totalorder %s9, 3
    %p48 = scmp.ne.s32.totalorder %s43, %s45
    %p49 = scmp.eq.s32.totalorder %s9, 0
    %p50 = por %p48, %p49
    %p51 = scmp.ne.s32.totalorder %s43, %s45
    %p52 = scmp.eq.s32.totalorder %s14, 3
    %p53 = por %p51, %p52
    %p54 = scmp.ne.s32.totalorder %s45, %s46
    %p55 = scmp.eq.s32.totalorder %s14, 0
    %p56 = por %p54, %p55
    %p57 = scmp.ne.s32.totalorder %s45, %s46
    %p58 = scmp.eq.s32.totalorder %s15, 3
    %p59 = por %p57, %p58
    %p61 = scmp.ne.s32.totalorder %s46, %s60
    %p62 = scmp.eq.s32.totalorder %s15, 0
    %p63 = por %p61, %p62
    %s65 = sadd.s32 %s64, 1
    %p68 = scmp.eq.s32.totalorder %s9, 3
    %p69 = scmp.ne.s32.totalorder %s64, %s66
    %p70 = scmp.eq.s32.totalorder %s9, 0
    %p71 = por %p69, %p70
    %p72 = scmp.ne.s32.totalorder %s64, %s66
    %p73 = scmp.eq.s32.totalorder %s14, 3
    %p74 = por %p72, %p73
    %p75 = scmp.ne.s32.totalorder %s66, %s67
    %p76 = scmp.eq.s32.totalorder %s14, 0
    %p77 = por %p75, %p76
    %p78 = scmp.ne.s32.totalorder %s66, %s67
    %p79 = scmp.eq.s32.totalorder %s15, 3
    %p80 = por %p78, %p79
    %p82 = scmp.ne.s32.totalorder %s67, %s81
    %p83 = scmp.eq.s32.totalorder %s15, 0
    %p84 = por %p82, %p83
    %s85 = ssub.s32 %s9, %s16
    %p86 = scmp.eq.s32.totalorder %s85, 0
    %s88 = sadd.s32 %s87, 1
    %s89 = scalar_select %p86, %s87, %s88
    %p92 = pneg %p86
    %p93 = scmp.eq.s32.totalorder %s9, 3
    %p94 = por %p92, %p93
    %p95 = scmp.ne.s32.totalorder %s87, %s90
    %p96 = scmp.eq.s32.totalorder %s9, 0
    %p97 = por %p95, %p96
    %p98 = scmp.ne.s32.totalorder %s87, %s90
    %p99 = scmp.eq.s32.totalorder %s14, 3
    %p100 = por %p98, %p99
    %p101 = scmp.ne.s32.totalorder %s90, %s91
    %p102 = scmp.eq.s32.totalorder %s14, 0
    %p103 = por %p101, %p102
    %p104 = scmp.ne.s32.totalorder %s90, %s91
    %p105 = scmp.eq.s32.totalorder %s15, 3
    %p106 = por %p104, %p105
    %p108 = scmp.ne.s32.totalorder %s91, %s107
    %p109 = scmp.eq.s32.totalorder %s15, 0
    %p110 = por %p108, %p109
    %p111 = scmp.le.s32.totalorder 1, %s9
    %p112 = scmp.lt.s32.totalorder %s9, 5
    %p113 = pnand %p111, %p112
    %p114 = pneg %p113
    // Predicated region
    $region9: #{autoencoder_forward_fused.1} parent=5 // pred_check
      _
    $region10: #{autoencoder_forward_fused.1} parent=5 // pred_check_branch
      %116 = sbr.rel (%p113) target = $region12
    $region11: #{autoencoder_forward_fused.1} parent=5 // pred_region
      %s117 = ssub.s32 %s9, 1
      // Predicated region
      $region13: #{autoencoder_forward_fused.1} parent=11 // pred_check
        %p118 = pneg %p56
      $region14: #{autoencoder_forward_fused.1} parent=11 // pred_check_branch
        %120 = sbr.rel (%p118) target = $region16
      $region15: #{autoencoder_forward_fused.1} parent=11 // pred_region
        _
      $region16: #{autoencoder_forward_fused.1} parent=11 // pred_fallthru
        _
      // Predicated region
      $region17: #{autoencoder_forward_fused.1} parent=11 // pred_check
        %p121 = pneg %p77
      $region18: #{autoencoder_forward_fused.1} parent=11 // pred_check_branch
        %123 = sbr.rel (%p121) target = $region20
      $region19: #{autoencoder_forward_fused.1} parent=11 // pred_region
        _
      $region20: #{autoencoder_forward_fused.1} parent=11 // pred_fallthru
        _
    $region12: #{autoencoder_forward_fused.1} parent=5 // pred_fallthru
      _
    %p124 = scmp.lt.s32.totalorder %s9, 4
    // Predicated region
    $region21: #{autoencoder_forward_fused.1} parent=5 // pred_check
      %p125 = pneg %p124
    $region22: #{autoencoder_forward_fused.1} parent=5 // pred_check_branch
      %127 = sbr.rel (%p125) target = $region24
    $region23: #{autoencoder_forward_fused.1} parent=5 // pred_region
      // Predicated region
      $region25: #{autoencoder_forward_fused.1} parent=23 // pred_check
        %p128 = pneg %p29
      $region26: #{autoencoder_forward_fused.1} parent=23 // pred_check_branch
        %130 = sbr.rel (%p128) target = $region28
      $region27: #{autoencoder_forward_fused.1} parent=23 // pred_region
        %s131 = smul.u32 64, %s9
        %p132 = scmp.lt.s32.totalorder %s131, 255
        %s133 = scalar_select %p132, %s131, 255
        %s134 = smul.addr %s133, 8
        %s135 = scalar_lea.vmem %s0, %s134
        %s136 = smul.u32 64, %s9
      $region28: #{autoencoder_forward_fused.1} parent=23 // pred_fallthru
        _
    $region24: #{autoencoder_forward_fused.1} parent=5 // pred_fallthru
      _
    %p137 = scmp.le.s32.totalorder 1, %s9
    %p138 = scmp.lt.s32.totalorder %s9, 5
    %p139 = pnand %p137, %p138
    %p140 = pneg %p139
    // Predicated region
    $region29: #{autoencoder_forward_fused.1} parent=5 // pred_check
      _
    $region30: #{autoencoder_forward_fused.1} parent=5 // pred_check_branch
      %142 = sbr.rel (%p139) target = $region32
    $region31: #{autoencoder_forward_fused.1} parent=5 // pred_region
      %s143 = ssub.s32 %s9, 1
      %s144 = smul.u32 64, %s14
      %p145 = scmp.lt.s32.totalorder %s144, 255
      %s146 = scalar_select %p145, %s144, 255
      %s147 = smul.addr %s146, 8
      %s148 = scalar_lea.vmem %s0, %s147
      %p149 = pneg %p35
      %p150 = pneg %p32
      %p151 = pneg %p56
      %p152 = pneg %p53
      %p153 = pneg %p77
      %p154 = pneg %p74
      %p155 = pneg %p103
      %p156 = pneg %p100
      %s157 = smul.u32 64, %s14
      %p158 = scmp.lt.s32.totalorder %s157, 255
      %s159 = scalar_select %p158, %s157, 255
      %s160 = smul.addr %s159, 8
      %s161 = scalar_lea.vmem %s3, %s160
      %s162 = smul.u32 64, %s14
      %p163 = scmp.lt.s32.totalorder %s162, 255
      %s164 = scalar_select %p163, %s162, 255
      %s165 = smul.addr %s164, 8
      %s166 = scalar_lea.vmem %s0, %s165
      %s167 = smul.u32 64, %s14
      %s168 = smul.u32 64, %s14
      %p169 = scmp.lt.s32.totalorder %s168, 255
      %s170 = scalar_select %p169, %s168, 255
      %s171 = smul.addr %s170, 8
      %s172 = scalar_lea.vmem %s3, %s171
      %s173 = smul.u32 64, %s14
      %v174 = vld [vmem:[%s166] sm:$0xff]
      %v175 = vld [vmem:[%s166 + $0x8] sm:$0xff]
      %v176 = vld [vmem:[%s166 + $0x10] sm:$0xff]
      %v177 = vld [vmem:[%s166 + $0x18] sm:$0xff]
      %v178 = vld [vmem:[%s166 + $0x20] sm:$0xff]
      %v179 = vld [vmem:[%s166 + $0x28] sm:$0xff]
      %v180 = vld [vmem:[%s166 + $0x30] sm:$0xff]
      %v181 = vld [vmem:[%s166 + $0x38] sm:$0xff]
      %v182 = vld [vmem:[%s166 + $0x40] sm:$0xff]
      %v183 = vld [vmem:[%s166 + $0x48] sm:$0xff]
      %v184 = vld [vmem:[%s166 + $0x50] sm:$0xff]
      %v185 = vld [vmem:[%s166 + $0x58] sm:$0xff]
      %v186 = vld [vmem:[%s166 + $0x60] sm:$0xff]
      %v187 = vld [vmem:[%s166 + $0x68] sm:$0xff]
      %v188 = vld [vmem:[%s166 + $0x70] sm:$0xff]
      %v189 = vld [vmem:[%s166 + $0x78] sm:$0xff]
      %v190 = vld [vmem:[%s166 + $0x80] sm:$0xff]
      %v191 = vld [vmem:[%s166 + $0x88] sm:$0xff]
      %v192 = vld [vmem:[%s166 + $0x90] sm:$0xff]
      %v193 = vld [vmem:[%s166 + $0x98] sm:$0xff]
      %v194 = vld [vmem:[%s166 + $0xa0] sm:$0xff]
      %v195 = vld [vmem:[%s166 + $0xa8] sm:$0xff]
      %v196 = vld [vmem:[%s166 + $0xb0] sm:$0xff]
      %v197 = vld [vmem:[%s166 + $0xb8] sm:$0xff]
      %v198 = vld [vmem:[%s166 + $0xc0] sm:$0xff]
      %v199 = vld [vmem:[%s166 + $0xc8] sm:$0xff]
      %v200 = vld [vmem:[%s166 + $0xd0] sm:$0xff]
      %v201 = vld [vmem:[%s166 + $0xd8] sm:$0xff]
      %v202 = vld [vmem:[%s166 + $0xe0] sm:$0xff]
      %v203 = vld [vmem:[%s166 + $0xe8] sm:$0xff]
      %v204 = vld [vmem:[%s166 + $0xf0] sm:$0xff]
      %v205 = vld [vmem:[%s166 + $0xf8] sm:$0xff]
      %v206 = vld [vmem:[%s166 + $0x100] sm:$0xff]
      %v207 = vld [vmem:[%s166 + $0x108] sm:$0xff]
      %v208 = vld [vmem:[%s166 + $0x110] sm:$0xff]
      %v209 = vld [vmem:[%s166 + $0x118] sm:$0xff]
      %v210 = vld [vmem:[%s166 + $0x120] sm:$0xff]
      %v211 = vld [vmem:[%s166 + $0x128] sm:$0xff]
      %v212 = vld [vmem:[%s166 + $0x130] sm:$0xff]
      %v213 = vld [vmem:[%s166 + $0x138] sm:$0xff]
      %v214 = vld [vmem:[%s166 + $0x140] sm:$0xff]
      %v215 = vld [vmem:[%s166 + $0x148] sm:$0xff]
      %v216 = vld [vmem:[%s166 + $0x150] sm:$0xff]
      %v217 = vld [vmem:[%s166 + $0x158] sm:$0xff]
      %v218 = vld [vmem:[%s166 + $0x160] sm:$0xff]
      %v219 = vld [vmem:[%s166 + $0x168] sm:$0xff]
      %v220 = vld [vmem:[%s166 + $0x170] sm:$0xff]
      %v221 = vld [vmem:[%s166 + $0x178] sm:$0xff]
      %v222 = vld [vmem:[%s166 + $0x180] sm:$0xff]
      %v223 = vld [vmem:[%s166 + $0x188] sm:$0xff]
      %v224 = vld [vmem:[%s166 + $0x190] sm:$0xff]
      %v225 = vld [vmem:[%s166 + $0x198] sm:$0xff]
      %v226 = vld [vmem:[%s166 + $0x1a0] sm:$0xff]
      %v227 = vld [vmem:[%s166 + $0x1a8] sm:$0xff]
      %v228 = vld [vmem:[%s166 + $0x1b0] sm:$0xff]
      %v229 = vld [vmem:[%s166 + $0x1b8] sm:$0xff]
      %v230 = vld [vmem:[%s166 + $0x1c0] sm:$0xff]
      %v231 = vld [vmem:[%s166 + $0x1c8] sm:$0xff]
      %v232 = vld [vmem:[%s166 + $0x1d0] sm:$0xff]
      %v233 = vld [vmem:[%s166 + $0x1d8] sm:$0xff]
      %v234 = vld [vmem:[%s166 + $0x1e0] sm:$0xff]
      %v235 = vld [vmem:[%s166 + $0x1e8] sm:$0xff]
      %v236 = vld [vmem:[%s166 + $0x1f0] sm:$0xff]
      %v237 = vld [vmem:[%s166 + $0x1f8] sm:$0xff]
      %v238 = vld [vmem:[%s1] sm:$0xff]
      %v239 = vld [vmem:[%s1 + $0x8] sm:$0xff]
      %v240 = vld [vmem:[%s1 + $0x10] sm:$0xff]
      %v241 = vld [vmem:[%s1 + $0x18] sm:$0xff]
      %v242 = vld [vmem:[%s2] sm:$0x1]
      %v244 = vlaneseq
      %v245 = vshrl.u32 %v244, 7
      %v246 = vsub.s32 0, %v245
      %v247 = vrot.slane %v242, %v246
      %vm249 = vcmask 261120
      %v251 = vsel %vm249, %v174, 0
      %v254 = vsel %vm249, %v175, 0
      %v257 = vsel %vm249, %v176, 0
      %v260 = vsel %vm249, %v177, 0
      %v263 = vsel %vm249, %v178, 0
      %v266 = vsel %vm249, %v179, 0
      %v269 = vsel %vm249, %v180, 0
      %v272 = vsel %vm249, %v181, 0
      %v275 = vsel %vm249, %v182, 0
      %v278 = vsel %vm249, %v183, 0
      %v281 = vsel %vm249, %v184, 0
      %v284 = vsel %vm249, %v185, 0
      %v287 = vsel %vm249, %v186, 0
      %v290 = vsel %vm249, %v187, 0
      %v293 = vsel %vm249, %v188, 0
      %v296 = vsel %vm249, %v189, 0
      %v299 = vsel %vm249, %v190, 0
      %v302 = vsel %vm249, %v191, 0
      %v305 = vsel %vm249, %v192, 0
      %v308 = vsel %vm249, %v193, 0
      %v311 = vsel %vm249, %v194, 0
      %v314 = vsel %vm249, %v195, 0
      %v317 = vsel %vm249, %v196, 0
      %v320 = vsel %vm249, %v197, 0
      %v323 = vsel %vm249, %v198, 0
      %v326 = vsel %vm249, %v199, 0
      %v329 = vsel %vm249, %v200, 0
      %v332 = vsel %vm249, %v201, 0
      %v335 = vsel %vm249, %v202, 0
      %v338 = vsel %vm249, %v203, 0
      %v341 = vsel %vm249, %v204, 0
      %v344 = vsel %vm249, %v205, 0
      %v347 = vsel %vm249, %v206, 0
      %v350 = vsel %vm249, %v207, 0
      %v353 = vsel %vm249, %v208, 0
      %v356 = vsel %vm249, %v209, 0
      %v359 = vsel %vm249, %v210, 0
      %v362 = vsel %vm249, %v211, 0
      %v365 = vsel %vm249, %v212, 0
      %v368 = vsel %vm249, %v213, 0
      %v371 = vsel %vm249, %v214, 0
      %v374 = vsel %vm249, %v215, 0
      %v377 = vsel %vm249, %v216, 0
      %v380 = vsel %vm249, %v217, 0
      %v383 = vsel %vm249, %v218, 0
      %v386 = vsel %vm249, %v219, 0
      %v389 = vsel %vm249, %v220, 0
      %v392 = vsel %vm249, %v221, 0
      %v395 = vsel %vm249, %v222, 0
      %v398 = vsel %vm249, %v223, 0
      %v401 = vsel %vm249, %v224, 0
      %v404 = vsel %vm249, %v225, 0
      %v407 = vsel %vm249, %v226, 0
      %v410 = vsel %vm249, %v227, 0
      %v413 = vsel %vm249, %v228, 0
      %v416 = vsel %vm249, %v229, 0
      %v419 = vsel %vm249, %v230, 0
      %v422 = vsel %vm249, %v231, 0
      %v425 = vsel %vm249, %v232, 0
      %v428 = vsel %vm249, %v233, 0
      %v431 = vsel %vm249, %v234, 0
      %v434 = vsel %vm249, %v235, 0
      %v437 = vsel %vm249, %v236, 0
      %v440 = vsel %vm249, %v237, 0
      %442 = vmatprep.subr.mxu0 0.0
      %443 = vmatpush1.msra.mxu0 %v238
      %444 = vmatprep.subr.mxu0 0.0
      %445 = vmatpush1.msra.mxu0 %v239
      %446 = vmatprep.subr.mxu0 0.0
      %447 = vmatpush1.msra.mxu0 %v240
      %448 = vmatprep.subr.mxu0 0.0
      %449 = vmatpush1.msra.mxu0 %v241
      %450 = vmatprep.subr.mxu0 0.0
      %451 = vmatpush1.msra.mxu0 0.0
      %452 = vmatprep.subr.mxu0 0.0
      %453 = vmatpush1.msra.mxu0 0.0
      %454 = vmatprep.subr.mxu0 0.0
      %455 = vmatpush1.msra.mxu0 0.0
      %456 = vmatprep.subr.mxu0 0.0
      %457 = vmatpush1.msra.mxu0 0.0
      %458 = vmatprep.subr.mxu0 0.0
      %459 = vmatpush1.msra.mxu0 0.0
      %460 = vmatprep.subr.mxu0 0.0
      %461 = vmatpush1.msra.mxu0 0.0
      %462 = vmatprep.subr.mxu0 0.0
      %463 = vmatpush1.msra.mxu0 0.0
      %464 = vmatprep.subr.mxu0 0.0
      %465 = vmatpush1.msra.mxu0 0.0
      %466 = vmatprep.subr.mxu0 0.0
      %467 = vmatpush1.msra.mxu0 0.0
      %468 = vmatprep.subr.mxu0 0.0
      %469 = vmatpush1.msra.mxu0 0.0
      %470 = vmatprep.subr.mxu0 0.0
      %471 = vmatpush1.msra.mxu0 0.0
      %472 = vmatprep.subr.mxu0 0.0
      %473 = vmatpush1.msra.mxu0 0.0
      %474 = vmatprep.subr.mxu0 0.0
      %475 = vmatpush1.msra.mxu0 0.0
      %476 = vmatprep.subr.mxu0 0.0
      %477 = vmatpush1.msra.mxu0 0.0
      %478 = vmatprep.subr.mxu0 0.0
      %479 = vmatpush1.msra.mxu0 0.0
      %480 = vmatprep.subr.mxu0 0.0
      %481 = vmatpush1.msra.mxu0 0.0
      %482 = vmatprep.subr.mxu0 0.0
      %483 = vmatpush1.msra.mxu0 0.0
      %484 = vmatprep.subr.mxu0 0.0
      %485 = vmatpush1.msra.mxu0 0.0
      %486 = vmatprep.subr.mxu0 0.0
      %487 = vmatpush1.msra.mxu0 0.0
      %488 = vmatprep.subr.mxu0 0.0
      %489 = vmatpush1.msra.mxu0 0.0
      %490 = vmatprep.subr.mxu0 0.0
      %491 = vmatpush1.msra.mxu0 0.0
      %492 = vmatprep.subr.mxu0 0.0
      %493 = vmatpush1.msra.mxu0 0.0
      %494 = vmatprep.subr.mxu0 0.0
      %495 = vmatpush1.msra.mxu0 0.0
      %496 = vmatprep.subr.mxu0 0.0
      %497 = vmatpush1.msra.mxu0 0.0
      %498 = vmatprep.subr.mxu0 0.0
      %499 = vmatpush1.msra.mxu0 0.0
      %500 = vmatprep.subr.mxu0 0.0
      %501 = vmatpush1.msra.mxu0 0.0
      %502 = vmatprep.subr.mxu0 0.0
      %503 = vmatpush1.msra.mxu0 0.0
      %504 = vmatprep.subr.mxu0 0.0
      %505 = vmatpush1.msra.mxu0 0.0
      %506 = vmatprep.mubr.f32.mxu0 0.0
      %507 = vmatmul.mubr.f32.gmra.mrb[0].mxu0 %v251
      %v508 = vpop.f32.mrb[0].mxu0
      %v509 = vadd.f32 %v247, %v508
      %v510 = vpop.f32.mrb[0].mxu0
      %511 = vmatprep.mubr.f32.mxu0 0.0
      %512 = vmatmul.mubr.f32.gmra.mrb[0].mxu0 %v254
      %v513 = vpop.f32.mrb[0].mxu0
      %v514 = vadd.f32 %v247, %v513
      %v515 = vpop.f32.mrb[0].mxu0
      %516 = vmatprep.mubr.f32.mxu0 0.0
      %517 = vmatmul.mubr.f32.gmra.mrb[0].mxu0 %v257
      %v518 = vpop.f32.mrb[0].mxu0
      %v519 = vadd.f32 %v247, %v518
      %v520 = vpop.f32.mrb[0].mxu0
      %521 = vmatprep.mubr.f32.mxu0 0.0
      %522 = vmatmul.mubr.f32.gmra.mrb[0].mxu0 %v260
      %v523 = vpop.f32.mrb[0].mxu0
      %v524 = vadd.f32 %v247, %v523
      %v525 = vpop.f32.mrb[0].mxu0
      %526 = vmatprep.mubr.f32.mxu0 0.0
      %527 = vmatmul.mubr.f32.gmra.mrb[0].mxu0 %v263
      %v528 = vpop.f32.mrb[0].mxu0
      %v529 = vadd.f32 %v247, %v528
      %v530 = vpop.f32.mrb[0].mxu0
      %531 = vmatprep.mubr.f32.mxu0 0.0
      %532 = vmatmul.mubr.f32.gmra.mrb[0].mxu0 %v266
      %v533 = vpop.f32.mrb[0].mxu0
      %v534 = vadd.f32 %v247, %v533
      %v535 = vpop.f32.mrb[0].mxu0
      %536 = vmatprep.mubr.f32.mxu0 0.0
      %537 = vmatmul.mubr.f32.gmra.mrb[0].mxu0 %v269
      %v538 = vpop.f32.mrb[0].mxu0
      %v539 = vadd.f32 %v247, %v538
      %v540 = vpop.f32.mrb[0].mxu0
      %541 = vmatprep.mubr.f32.mxu0 0.0
      %542 = vmatmul.mubr.f32.gmra.mrb[0].mxu0 %v272
      %v543 = vpop.f32.mrb[0].mxu0
      %v544 = vadd.f32 %v247, %v543
      %v545 = vpop.f32.mrb[0].mxu0
      %546 = vmatprep.mubr.f32.mxu0 0.0
      %547 = vmatmul.mubr.f32.gmra.mrb[0].mxu0 %v275
      %v548 = vpop.f32.mrb[0].mxu0
      %v549 = vadd.f32 %v247, %v548
      %v550 = vpop.f32.mrb[0].mxu0
      %551 = vmatprep.mubr.f32.mxu0 0.0
      %552 = vmatmul.mubr.f32.gmra.mrb[0].mxu0 %v278
      %v553 = vpop.f32.mrb[0].mxu0
      %v554 = vadd.f32 %v247, %v553
      %v555 = vpop.f32.mrb[0].mxu0
      %556 = vmatprep.mubr.f32.mxu0 0.0
      %557 = vmatmul.mubr.f32.gmra.mrb[0].mxu0 %v281
      %v558 = vpop.f32.mrb[0].mxu0
      %v559 = vadd.f32 %v247, %v558
      %v560 = vpop.f32.mrb[0].mxu0
      %561 = vmatprep.mubr.f32.mxu0 0.0
      %562 = vmatmul.mubr.f32.gmra.mrb[0].mxu0 %v284
      %v563 = vpop.f32.mrb[0].mxu0
      %v564 = vadd.f32 %v247, %v563
      %v565 = vpop.f32.mrb[0].mxu0
      %566 = vmatprep.mubr.f32.mxu0 0.0
      %567 = vmatmul.mubr.f32.gmra.mrb[0].mxu0 %v287
      %v568 = vpop.f32.mrb[0].mxu0
      %v569 = vadd.f32 %v247, %v568
      %v570 = vpop.f32.mrb[0].mxu0
      %571 = vmatprep.mubr.f32.mxu0 0.0
      %572 = vmatmul.mubr.f32.gmra.mrb[0].mxu0 %v290
      %v573 = vpop.f32.mrb[0].mxu0
      %v574 = vadd.f32 %v247, %v573
      %v575 = vpop.f32.mrb[0].mxu0
      %576 = vmatprep.mubr.f32.mxu0 0.0
      %577 = vmatmul.mubr.f32.gmra.mrb[0].mxu0 %v293
      %v578 = vpop.f32.mrb[0].mxu0
      %v579 = vadd.f32 %v247, %v578
      %v580 = vpop.f32.mrb[0].mxu0
      %581 = vmatprep.mubr.f32.mxu0 0.0
      %582 = vmatmul.mubr.f32.gmra.mrb[0].mxu0 %v296
      %v583 = vpop.f32.mrb[0].mxu0
      %v584 = vadd.f32 %v247, %v583
      %v585 = vpop.f32.mrb[0].mxu0
      %586 = vmatprep.mubr.f32.mxu0 0.0
      %587 = vmatmul.mubr.f32.gmra.mrb[0].mxu0 %v299
      %v588 = vpop.f32.mrb[0].mxu0
      %v589 = vadd.f32 %v247, %v588
      %v590 = vpop.f32.mrb[0].mxu0
      %591 = vmatprep.mubr.f32.mxu0 0.0
      %592 = vmatmul.mubr.f32.gmra.mrb[0].mxu0 %v302
      %v593 = vpop.f32.mrb[0].mxu0
      %v594 = vadd.f32 %v247, %v593
      %v595 = vpop.f32.mrb[0].mxu0
      %596 = vmatprep.mubr.f32.mxu0 0.0
      %597 = vmatmul.mubr.f32.gmra.mrb[0].mxu0 %v305
      %v598 = vpop.f32.mrb[0].mxu0
      %v599 = vadd.f32 %v247, %v598
      %v600 = vpop.f32.mrb[0].mxu0
      %601 = vmatprep.mubr.f32.mxu0 0.0
      %602 = vmatmul.mubr.f32.gmra.mrb[0].mxu0 %v308
      %v603 = vpop.f32.mrb[0].mxu0
      %v604 = vadd.f32 %v247, %v603
      %v605 = vpop.f32.mrb[0].mxu0
      %606 = vmatprep.mubr.f32.mxu0 0.0
      %607 = vmatmul.mubr.f32.gmra.mrb[0].mxu0 %v311
      %v608 = vpop.f32.mrb[0].mxu0
      %v609 = vadd.f32 %v247, %v608
      %v610 = vpop.f32.mrb[0].mxu0
      %611 = vmatprep.mubr.f32.mxu0 0.0
      %612 = vmatmul.mubr.f32.gmra.mrb[0].mxu0 %v314
      %v613 = vpop.f32.mrb[0].mxu0
      %v614 = vadd.f32 %v247, %v613
      %v615 = vpop.f32.mrb[0].mxu0
      %616 = vmatprep.mubr.f32.mxu0 0.0
      %617 = vmatmul.mubr.f32.gmra.mrb[0].mxu0 %v317
      %v618 = vpop.f32.mrb[0].mxu0
      %v619 = vadd.f32 %v247, %v618
      %v620 = vpop.f32.mrb[0].mxu0
      %621 = vmatprep.mubr.f32.mxu0 0.0
      %622 = vmatmul.mubr.f32.gmra.mrb[0].mxu0 %v320
      %v623 = vpop.f32.mrb[0].mxu0
      %v624 = vadd.f32 %v247, %v623
      %v625 = vpop.f32.mrb[0].mxu0
      %626 = vmatprep.mubr.f32.mxu0 0.0
      %627 = vmatmul.mubr.f32.gmra.mrb[0].mxu0 %v323
      %v628 = vpop.f32.mrb[0].mxu0
      %v629 = vadd.f32 %v247, %v628
      %v630 = vpop.f32.mrb[0].mxu0
      %631 = vmatprep.mubr.f32.mxu0 0.0
      %632 = vmatmul.mubr.f32.gmra.mrb[0].mxu0 %v326
      %v633 = vpop.f32.mrb[0].mxu0
      %v634 = vadd.f32 %v247, %v633
      %v635 = vpop.f32.mrb[0].mxu0
      %636 = vmatprep.mubr.f32.mxu0 0.0
      %637 = vmatmul.mubr.f32.gmra.mrb[0].mxu0 %v329
      %v638 = vpop.f32.mrb[0].mxu0
      %v639 = vadd.f32 %v247, %v638
      %v640 = vpop.f32.mrb[0].mxu0
      %641 = vmatprep.mubr.f32.mxu0 0.0
      %642 = vmatmul.mubr.f32.gmra.mrb[0].mxu0 %v332
      %v643 = vpop.f32.mrb[0].mxu0
      %v644 = vadd.f32 %v247, %v643
      %v645 = vpop.f32.mrb[0].mxu0
      %646 = vmatprep.mubr.f32.mxu0 0.0
      %647 = vmatmul.mubr.f32.gmra.mrb[0].mxu0 %v335
      %v648 = vpop.f32.mrb[0].mxu0
      %v649 = vadd.f32 %v247, %v648
      %v650 = vpop.f32.mrb[0].mxu0
      %651 = vmatprep.mubr.f32.mxu0 0.0
      %652 = vmatmul.mubr.f32.gmra.mrb[0].mxu0 %v338
      %v653 = vpop.f32.mrb[0].mxu0
      %v654 = vadd.f32 %v247, %v653
      %v655 = vpop.f32.mrb[0].mxu0
      %656 = vmatprep.mubr.f32.mxu0 0.0
      %657 = vmatmul.mubr.f32.gmra.mrb[0].mxu0 %v341
      %v658 = vpop.f32.mrb[0].mxu0
      %v659 = vadd.f32 %v247, %v658
      %v660 = vpop.f32.mrb[0].mxu0
      %661 = vmatprep.mubr.f32.mxu0 0.0
      %662 = vmatmul.mubr.f32.gmra.mrb[0].mxu0 %v344
      %v663 = vpop.f32.mrb[0].mxu0
      %v664 = vadd.f32 %v247, %v663
      %v665 = vpop.f32.mrb[0].mxu0
      %666 = vmatprep.mubr.f32.mxu0 0.0
      %667 = vmatmul.mubr.f32.gmra.mrb[0].mxu0 %v347
      %v668 = vpop.f32.mrb[0].mxu0
      %v669 = vadd.f32 %v247, %v668
      %v670 = vpop.f32.mrb[0].mxu0
      %671 = vmatprep.mubr.f32.mxu0 0.0
      %672 = vmatmul.mubr.f32.gmra.mrb[0].mxu0 %v350
      %v673 = vpop.f32.mrb[0].mxu0
      %v674 = vadd.f32 %v247, %v673
      %v675 = vpop.f32.mrb[0].mxu0
      %676 = vmatprep.mubr.f32.mxu0 0.0
      %677 = vmatmul.mubr.f32.gmra.mrb[0].mxu0 %v353
      %v678 = vpop.f32.mrb[0].mxu0
      %v679 = vadd.f32 %v247, %v678
      %v680 = vpop.f32.mrb[0].mxu0
      %681 = vmatprep.mubr.f32.mxu0 0.0
      %682 = vmatmul.mubr.f32.gmra.mrb[0].mxu0 %v356
      %v683 = vpop.f32.mrb[0].mxu0
      %v684 = vadd.f32 %v247, %v683
      %v685 = vpop.f32.mrb[0].mxu0
      %686 = vmatprep.mubr.f32.mxu0 0.0
      %687 = vmatmul.mubr.f32.gmra.mrb[0].mxu0 %v359
      %v688 = vpop.f32.mrb[0].mxu0
      %v689 = vadd.f32 %v247, %v688
      %v690 = vpop.f32.mrb[0].mxu0
      %691 = vmatprep.mubr.f32.mxu0 0.0
      %692 = vmatmul.mubr.f32.gmra.mrb[0].mxu0 %v362
      %v693 = vpop.f32.mrb[0].mxu0
      %v694 = vadd.f32 %v247, %v693
      %v695 = vpop.f32.mrb[0].mxu0
      %696 = vmatprep.mubr.f32.mxu0 0.0
      %697 = vmatmul.mubr.f32.gmra.mrb[0].mxu0 %v365
      %v698 = vpop.f32.mrb[0].mxu0
      %v699 = vadd.f32 %v247, %v698
      %v700 = vpop.f32.mrb[0].mxu0
      %701 = vmatprep.mubr.f32.mxu0 0.0
      %702 = vmatmul.mubr.f32.gmra.mrb[0].mxu0 %v368
      %v703 = vpop.f32.mrb[0].mxu0
      %v704 = vadd.f32 %v247, %v703
      %v705 = vpop.f32.mrb[0].mxu0
      %706 = vmatprep.mubr.f32.mxu0 0.0
      %707 = vmatmul.mubr.f32.gmra.mrb[0].mxu0 %v371
      %v708 = vpop.f32.mrb[0].mxu0
      %v709 = vadd.f32 %v247, %v708
      %v710 = vpop.f32.mrb[0].mxu0
      %711 = vmatprep.mubr.f32.mxu0 0.0
      %712 = vmatmul.mubr.f32.gmra.mrb[0].mxu0 %v374
      %v713 = vpop.f32.mrb[0].mxu0
      %v714 = vadd.f32 %v247, %v713
      %v715 = vpop.f32.mrb[0].mxu0
      %716 = vmatprep.mubr.f32.mxu0 0.0
      %717 = vmatmul.mubr.f32.gmra.mrb[0].mxu0 %v377
      %v718 = vpop.f32.mrb[0].mxu0
      %v719 = vadd.f32 %v247, %v718
      %v720 = vpop.f32.mrb[0].mxu0
      %721 = vmatprep.mubr.f32.mxu0 0.0
      %722 = vmatmul.mubr.f32.gmra.mrb[0].mxu0 %v380
      %v723 = vpop.f32.mrb[0].mxu0
      %v724 = vadd.f32 %v247, %v723
      %v725 = vpop.f32.mrb[0].mxu0
      %726 = vmatprep.mubr.f32.mxu0 0.0
      %727 = vmatmul.mubr.f32.gmra.mrb[0].mxu0 %v383
      %v728 = vpop.f32.mrb[0].mxu0
      %v729 = vadd.f32 %v247, %v728
      %v730 = vpop.f32.mrb[0].mxu0
      %731 = vmatprep.mubr.f32.mxu0 0.0
      %732 = vmatmul.mubr.f32.gmra.mrb[0].mxu0 %v386
      %v733 = vpop.f32.mrb[0].mxu0
      %v734 = vadd.f32 %v247, %v733
      %v735 = vpop.f32.mrb[0].mxu0
      %736 = vmatprep.mubr.f32.mxu0 0.0
      %737 = vmatmul.mubr.f32.gmra.mrb[0].mxu0 %v389
      %v738 = vpop.f32.mrb[0].mxu0
      %v739 = vadd.f32 %v247, %v738
      %v740 = vpop.f32.mrb[0].mxu0
      %741 = vmatprep.mubr.f32.mxu0 0.0
      %742 = vmatmul.mubr.f32.gmra.mrb[0].mxu0 %v392
      %v743 = vpop.f32.mrb[0].mxu0
      %v744 = vadd.f32 %v247, %v743
      %v745 = vpop.f32.mrb[0].mxu0
      %746 = vmatprep.mubr.f32.mxu0 0.0
      %747 = vmatmul.mubr.f32.gmra.mrb[0].mxu0 %v395
      %v748 = vpop.f32.mrb[0].mxu0
      %v749 = vadd.f32 %v247, %v748
      %v750 = vpop.f32.mrb[0].mxu0
      %751 = vmatprep.mubr.f32.mxu0 0.0
      %752 = vmatmul.mubr.f32.gmra.mrb[0].mxu0 %v398
      %v753 = vpop.f32.mrb[0].mxu0
      %v754 = vadd.f32 %v247, %v753
      %v755 = vpop.f32.mrb[0].mxu0
      %756 = vmatprep.mubr.f32.mxu0 0.0
      %757 = vmatmul.mubr.f32.gmra.mrb[0].mxu0 %v401
      %v758 = vpop.f32.mrb[0].mxu0
      %v759 = vadd.f32 %v247, %v758
      %v760 = vpop.f32.mrb[0].mxu0
      %761 = vmatprep.mubr.f32.mxu0 0.0
      %762 = vmatmul.mubr.f32.gmra.mrb[0].mxu0 %v404
      %v763 = vpop.f32.mrb[0].mxu0
      %v764 = vadd.f32 %v247, %v763
      %v765 = vpop.f32.mrb[0].mxu0
      %766 = vmatprep.mubr.f32.mxu0 0.0
      %767 = vmatmul.mubr.f32.gmra.mrb[0].mxu0 %v407
      %v768 = vpop.f32.mrb[0].mxu0
      %v769 = vadd.f32 %v247, %v768
      %v770 = vpop.f32.mrb[0].mxu0
      %771 = vmatprep.mubr.f32.mxu0 0.0
      %772 = vmatmul.mubr.f32.gmra.mrb[0].mxu0 %v410
      %v773 = vpop.f32.mrb[0].mxu0
      %v774 = vadd.f32 %v247, %v773
      %v775 = vpop.f32.mrb[0].mxu0
      %776 = vmatprep.mubr.f32.mxu0 0.0
      %777 = vmatmul.mubr.f32.gmra.mrb[0].mxu0 %v413
      %v778 = vpop.f32.mrb[0].mxu0
      %v779 = vadd.f32 %v247, %v778
      %v780 = vpop.f32.mrb[0].mxu0
      %781 = vmatprep.mubr.f32.mxu0 0.0
      %782 = vmatmul.mubr.f32.gmra.mrb[0].mxu0 %v416
      %v783 = vpop.f32.mrb[0].mxu0
      %v784 = vadd.f32 %v247, %v783
      %v785 = vpop.f32.mrb[0].mxu0
      %786 = vmatprep.mubr.f32.mxu0 0.0
      %787 = vmatmul.mubr.f32.gmra.mrb[0].mxu0 %v419
      %v788 = vpop.f32.mrb[0].mxu0
      %v789 = vadd.f32 %v247, %v788
      %v790 = vpop.f32.mrb[0].mxu0
      %791 = vmatprep.mubr.f32.mxu0 0.0
      %792 = vmatmul.mubr.f32.gmra.mrb[0].mxu0 %v422
      %v793 = vpop.f32.mrb[0].mxu0
      %v794 = vadd.f32 %v247, %v793
      %v795 = vpop.f32.mrb[0].mxu0
      %796 = vmatprep.mubr.f32.mxu0 0.0
      %797 = vmatmul.mubr.f32.gmra.mrb[0].mxu0 %v425
      %v798 = vpop.f32.mrb[0].mxu0
      %v799 = vadd.f32 %v247, %v798
      %v800 = vpop.f32.mrb[0].mxu0
      %801 = vmatprep.mubr.f32.mxu0 0.0
      %802 = vmatmul.mubr.f32.gmra.mrb[0].mxu0 %v428
      %v803 = vpop.f32.mrb[0].mxu0
      %v804 = vadd.f32 %v247, %v803
      %v805 = vpop.f32.mrb[0].mxu0
      %806 = vmatprep.mubr.f32.mxu0 0.0
      %807 = vmatmul.mubr.f32.gmra.mrb[0].mxu0 %v431
      %v808 = vpop.f32.mrb[0].mxu0
      %v809 = vadd.f32 %v247, %v808
      %v810 = vpop.f32.mrb[0].mxu0
      %811 = vmatprep.mubr.f32.mxu0 0.0
      %812 = vmatmul.mubr.f32.gmra.mrb[0].mxu0 %v434
      %v813 = vpop.f32.mrb[0].mxu0
      %v814 = vadd.f32 %v247, %v813
      %v815 = vpop.f32.mrb[0].mxu0
      %816 = vmatprep.mubr.f32.mxu0 0.0
      %817 = vmatmul.mubr.f32.gmra.mrb[0].mxu0 %v437
      %v818 = vpop.f32.mrb[0].mxu0
      %v819 = vadd.f32 %v247, %v818
      %v820 = vpop.f32.mrb[0].mxu0
      %821 = vmatprep.mubr.f32.mxu0 0.0
      %822 = vmatmul.mubr.f32.gmra.mrb[0].mxu0 %v440
      %v823 = vpop.f32.mrb[0].mxu0
      %v824 = vadd.f32 %v247, %v823
      %v825 = vpop.f32.mrb[0].mxu0
      %826 = vdwg.mxu0
      %827 = vst.msk [vmem:[%s172] sm:$0xff] %vm249, %v509
      %828 = vst.msk [vmem:[%s172 + $0x8] sm:$0xff] %vm249, %v514
      %829 = vst.msk [vmem:[%s172 + $0x10] sm:$0xff] %vm249, %v519
      %830 = vst.msk [vmem:[%s172 + $0x18] sm:$0xff] %vm249, %v524
      %831 = vst.msk [vmem:[%s172 + $0x20] sm:$0xff] %vm249, %v529
      %832 = vst.msk [vmem:[%s172 + $0x28] sm:$0xff] %vm249, %v534
      %833 = vst.msk [vmem:[%s172 + $0x30] sm:$0xff] %vm249, %v539
      %834 = vst.msk [vmem:[%s172 + $0x38] sm:$0xff] %vm249, %v544
      %835 = vst.msk [vmem:[%s172 + $0x40] sm:$0xff] %vm249, %v549
      %836 = vst.msk [vmem:[%s172 + $0x48] sm:$0xff] %vm249, %v554
      %837 = vst.msk [vmem:[%s172 + $0x50] sm:$0xff] %vm249, %v559
      %838 = vst.msk [vmem:[%s172 + $0x58] sm:$0xff] %vm249, %v564
      %839 = vst.msk [vmem:[%s172 + $0x60] sm:$0xff] %vm249, %v569
      %840 = vst.msk [vmem:[%s172 + $0x68] sm:$0xff] %vm249, %v574
      %841 = vst.msk [vmem:[%s172 + $0x70] sm:$0xff] %vm249, %v579
      %842 = vst.msk [vmem:[%s172 + $0x78] sm:$0xff] %vm249, %v584
      %843 = vst.msk [vmem:[%s172 + $0x80] sm:$0xff] %vm249, %v589
      %844 = vst.msk [vmem:[%s172 + $0x88] sm:$0xff] %vm249, %v594
      %845 = vst.msk [vmem:[%s172 + $0x90] sm:$0xff] %vm249, %v599
      %846 = vst.msk [vmem:[%s172 + $0x98] sm:$0xff] %vm249, %v604
      %847 = vst.msk [vmem:[%s172 + $0xa0] sm:$0xff] %vm249, %v609
      %848 = vst.msk [vmem:[%s172 + $0xa8] sm:$0xff] %vm249, %v614
      %849 = vst.msk [vmem:[%s172 + $0xb0] sm:$0xff] %vm249, %v619
      %850 = vst.msk [vmem:[%s172 + $0xb8] sm:$0xff] %vm249, %v624
      %851 = vst.msk [vmem:[%s172 + $0xc0] sm:$0xff] %vm249, %v629
      %852 = vst.msk [vmem:[%s172 + $0xc8] sm:$0xff] %vm249, %v634
      %853 = vst.msk [vmem:[%s172 + $0xd0] sm:$0xff] %vm249, %v639
      %854 = vst.msk [vmem:[%s172 + $0xd8] sm:$0xff] %vm249, %v644
      %855 = vst.msk [vmem:[%s172 + $0xe0] sm:$0xff] %vm249, %v649
      %856 = vst.msk [vmem:[%s172 + $0xe8] sm:$0xff] %vm249, %v654
      %857 = vst.msk [vmem:[%s172 + $0xf0] sm:$0xff] %vm249, %v659
      %858 = vst.msk [vmem:[%s172 + $0xf8] sm:$0xff] %vm249, %v664
      %859 = vst.msk [vmem:[%s172 + $0x100] sm:$0xff] %vm249, %v669
      %860 = vst.msk [vmem:[%s172 + $0x108] sm:$0xff] %vm249, %v674
      %861 = vst.msk [vmem:[%s172 + $0x110] sm:$0xff] %vm249, %v679
      %862 = vst.msk [vmem:[%s172 + $0x118] sm:$0xff] %vm249, %v684
      %863 = vst.msk [vmem:[%s172 + $0x120] sm:$0xff] %vm249, %v689
      %864 = vst.msk [vmem:[%s172 + $0x128] sm:$0xff] %vm249, %v694
      %865 = vst.msk [vmem:[%s172 + $0x130] sm:$0xff] %vm249, %v699
      %866 = vst.msk [vmem:[%s172 + $0x138] sm:$0xff] %vm249, %v704
      %867 = vst.msk [vmem:[%s172 + $0x140] sm:$0xff] %vm249, %v709
      %868 = vst.msk [vmem:[%s172 + $0x148] sm:$0xff] %vm249, %v714
      %869 = vst.msk [vmem:[%s172 + $0x150] sm:$0xff] %vm249, %v719
      %870 = vst.msk [vmem:[%s172 + $0x158] sm:$0xff] %vm249, %v724
      %871 = vst.msk [vmem:[%s172 + $0x160] sm:$0xff] %vm249, %v729
      %872 = vst.msk [vmem:[%s172 + $0x168] sm:$0xff] %vm249, %v734
      %873 = vst.msk [vmem:[%s172 + $0x170] sm:$0xff] %vm249, %v739
      %874 = vst.msk [vmem:[%s172 + $0x178] sm:$0xff] %vm249, %v744
      %875 = vst.msk [vmem:[%s172 + $0x180] sm:$0xff] %vm249, %v749
      %876 = vst.msk [vmem:[%s172 + $0x188] sm:$0xff] %vm249, %v754
      %877 = vst.msk [vmem:[%s172 + $0x190] sm:$0xff] %vm249, %v759
      %878 = vst.msk [vmem:[%s172 + $0x198] sm:$0xff] %vm249, %v764
      %879 = vst.msk [vmem:[%s172 + $0x1a0] sm:$0xff] %vm249, %v769
      %880 = vst.msk [vmem:[%s172 + $0x1a8] sm:$0xff] %vm249, %v774
      %881 = vst.msk [vmem:[%s172 + $0x1b0] sm:$0xff] %vm249, %v779
      %882 = vst.msk [vmem:[%s172 + $0x1b8] sm:$0xff] %vm249, %v784
      %883 = vst.msk [vmem:[%s172 + $0x1c0] sm:$0xff] %vm249, %v789
      %884 = vst.msk [vmem:[%s172 + $0x1c8] sm:$0xff] %vm249, %v794
      %885 = vst.msk [vmem:[%s172 + $0x1d0] sm:$0xff] %vm249, %v799
      %886 = vst.msk [vmem:[%s172 + $0x1d8] sm:$0xff] %vm249, %v804
      %887 = vst.msk [vmem:[%s172 + $0x1e0] sm:$0xff] %vm249, %v809
      %888 = vst.msk [vmem:[%s172 + $0x1e8] sm:$0xff] %vm249, %v814
      %889 = vst.msk [vmem:[%s172 + $0x1f0] sm:$0xff] %vm249, %v819
      %890 = vst.msk [vmem:[%s172 + $0x1f8] sm:$0xff] %vm249, %v824
      %s891 = smul.u32 64, %s14
      %p892 = scmp.lt.s32.totalorder %s891, 255
      %s893 = scalar_select %p892, %s891, 255
      %s894 = smul.addr %s893, 8
      %s895 = scalar_lea.vmem %s3, %s894
      // Predicated region
      $region33: #{autoencoder_forward_fused.1} parent=31 // pred_check
        %p896 = pneg %p100
      $region34: #{autoencoder_forward_fused.1} parent=31 // pred_check_branch
        %898 = sbr.rel (%p896) target = $region36
      $region35: #{autoencoder_forward_fused.1} parent=31 // pred_region
        %s899 = smul.u32 64, %s14
      $region36: #{autoencoder_forward_fused.1} parent=31 // pred_fallthru
        _
    $region32: #{autoencoder_forward_fused.1} parent=5 // pred_fallthru
      _
    %p900 = scmp.le.s32.totalorder 2, %s9
    // Predicated region
    $region37: #{autoencoder_forward_fused.1} parent=5 // pred_check
      %p901 = pneg %p900
    $region38: #{autoencoder_forward_fused.1} parent=5 // pred_check_branch
      %903 = sbr.rel (%p901) target = $region40
    $region39: #{autoencoder_forward_fused.1} parent=5 // pred_region
      %s904 = ssub.s32 %s9, 2
      // Predicated region
      $region41: #{autoencoder_forward_fused.1} parent=39 // pred_check
        %p905 = pneg %p106
      $region42: #{autoencoder_forward_fused.1} parent=39 // pred_check_branch
        %907 = sbr.rel (%p905) target = $region44
      $region43: #{autoencoder_forward_fused.1} parent=39 // pred_region
        %s908 = smul.u32 64, %s15
        %p909 = scmp.lt.s32.totalorder %s908, 255
        %s910 = scalar_select %p909, %s908, 255
        %s911 = smul.addr %s910, 8
        %s912 = scalar_lea.vmem %s3, %s911
      $region44: #{autoencoder_forward_fused.1} parent=39 // pred_fallthru
        _
    $region40: #{autoencoder_forward_fused.1} parent=5 // pred_fallthru
      _
  $region6: #{autoencoder_forward_fused.1} parent=0 // loop_footer
    %s13 = sadd.s32 1, %s9
  $region7: #{autoencoder_forward_fused.1} parent=0 // loop_footer_branch
    %8 = sbr.rel target = $region3
  $region8: #{autoencoder_forward_fused.1} parent=0 // loop_exit
    _

</llo_original>
